<compile_context>
chip_gen: v7x
topology: tpu7x:2x2x1
jax: 0.10.0
libtpu: 0.0.40
codegen_flags: <defaults>
</compile_context>

<pallas_src>
import functools

import jax
import jax.numpy as jnp
from jax.experimental import pallas as pl
from jax.experimental.pallas import tpu as pltpu

_HID = 128  # linear1 output width (fixed by the module definition)


def _cdefunc_kernel(z_ref, w1_ref, b1_ref, w2_ref, b2_ref, out_ref):
    # z_ref  : (TM, dim_hidden)
    # w1_ref : (dim_hidden, 128)       b1_ref: (1, 128)
    # w2_ref : (128, out_feat_padded)  b2_ref: (1, out_feat_padded)
    # out_ref: (TM, out_feat_padded)

    # linear1 + relu  (MXU matmul, VPU max)
    h = jnp.dot(z_ref[...], w1_ref[...], preferred_element_type=jnp.float32)
    h = jnp.maximum(h + b1_ref[...], 0.0)

    # linear2 + tanh  (MXU matmul, EUP tanh)
    o = jnp.dot(h, w2_ref[...], preferred_element_type=jnp.float32)
    out_ref[...] = jnp.tanh(o + b2_ref[...]).astype(out_ref.dtype)


def _round_up(x, m):
    return ((x + m - 1) // m) * m


def _choose_tm(batch, dim_hidden, out_feat_p, budget_bytes=20 << 20):
    """Pick a batch tile size so double-buffered z/out tiles plus the resident
    weights stay under a conservative VMEM budget (works on v5e/v6e/v7x)."""
    itemsize = 4  # f32
    w_bytes = (dim_hidden * _HID + _HID * out_feat_p + _HID + out_feat_p) * itemsize
    per_row = 2 * (dim_hidden + out_feat_p) * itemsize  # double-buffered in + out
    tm = (budget_bytes - w_bytes) // max(per_row, 1)
    tm = max(8, min(512, int(tm)))
    tm = (tm // 8) * 8
    # Don't tile far past the (padded) batch for tiny problems.
    tm = min(tm, _round_up(batch, 8))
    return max(8, tm)


@functools.partial(jax.jit, static_argnames=("dim", "dim_hidden"))
def _cdefunc_call(z, w1, b1, w2, b2, *, dim, dim_hidden):
    B = z.shape[0]
    out_feat = dim * dim_hidden
    out_feat_p = _round_up(out_feat, 128)     # lane-dense output tile
    tm = _choose_tm(B, dim_hidden, out_feat_p)
    B_p = _round_up(B, tm)
    grid_m = B_p // tm

    z = z.astype(jnp.float32)
    # Zero-pad batch rows (sliced off below) and w2/b2 columns (zeros -> the
    # padded output columns are tanh(0)=0 and never leak into real outputs).
    if B_p != B:
        z = jnp.pad(z, ((0, B_p - B), (0, 0)))
    if out_feat_p != out_feat:
        w2 = jnp.pad(w2, ((0, 0), (0, out_feat_p - out_feat)))
        b2 = jnp.pad(b2, ((0, 0), (0, out_feat_p - out_feat)))

    itemsize = 4
    vmem_need = (
        (dim_hidden * _HID + _HID * out_feat_p + _HID + out_feat_p) * itemsize
        + 2 * tm * (dim_hidden + out_feat_p) * itemsize   # double-buffered i/o
        + tm * _HID * itemsize                            # intermediate h
        + (4 << 20)                                       # margin
    )
    vmem_limit = int(min(max(vmem_need, 32 << 20), 48 << 20))

    cost = pl.CostEstimate(
        flops=2 * B_p * (dim_hidden * _HID + _HID * out_feat_p),
        transcendentals=B_p * out_feat_p,
        bytes_accessed=(B_p * dim_hidden + dim_hidden * _HID + _HID
                        + _HID * out_feat_p + out_feat_p
                        + B_p * out_feat_p) * itemsize,
    )

    out2d = pl.pallas_call(
        _cdefunc_kernel,
        out_shape=jax.ShapeDtypeStruct((B_p, out_feat_p), jnp.float32),
        grid=(grid_m,),
        in_specs=[
            pl.BlockSpec((tm, dim_hidden), lambda i: (i, 0)),       # z tile
            pl.BlockSpec((dim_hidden, _HID), lambda i: (0, 0)),     # w1 resident
            pl.BlockSpec((1, _HID), lambda i: (0, 0)),              # b1 resident
            pl.BlockSpec((_HID, out_feat_p), lambda i: (0, 0)),     # w2 resident
            pl.BlockSpec((1, out_feat_p), lambda i: (0, 0)),        # b2 resident
        ],
        out_specs=pl.BlockSpec((tm, out_feat_p), lambda i: (i, 0)),
        compiler_params=pltpu.CompilerParams(
            dimension_semantics=("parallel",),
            vmem_limit_bytes=vmem_limit,
        ),
        cost_estimate=cost,
    )(z, w1, b1, w2, b2)

    out2d = out2d[:B, :out_feat]
    # torch: z.view(B, hidden_dim, input_dim) on a contiguous row-major tensor
    return out2d.reshape(B, dim_hidden, dim)


def cdefunc_forward(t, z, params):
    """Pallas implementation of CDEFunc.forward.

    t is unused (kept for API parity with the PyTorch module).
    z: (B, dim_hidden) float32
    returns: (B, dim_hidden, dim) float32
    """
    del t
    return _cdefunc_call(
        z, params["w1"], params["b1"], params["w2"], params["b2"],
        dim=params["dim"], dim_hidden=params["dim_hidden"],
    )


def init_params(key, dim, dim_hidden):
    """Deterministic synthetic parameters with nn.Linear-like shapes.

    Weights are stored pre-transposed as (in_features, out_features)."""
    k1, k2, k3, k4 = jax.random.split(key, 4)
    out_feat = dim * dim_hidden
    # Uniform(-1/sqrt(fan_in), 1/sqrt(fan_in)), like PyTorch's default init.
    lim1 = 1.0 / jnp.sqrt(dim_hidden)
    lim2 = 1.0 / jnp.sqrt(_HID)
    w1 = jax.random.uniform(k1, (dim_hidden, _HID), jnp.float32, -lim1, lim1)
    b1 = jax.random.uniform(k2, (1, _HID), jnp.float32, -lim1, lim1)
    w2 = jax.random.uniform(k3, (_HID, out_feat), jnp.float32, -lim2, lim2)
    b2 = jax.random.uniform(k4, (1, out_feat), jnp.float32, -lim2, lim2)
    return {"w1": w1, "b1": b1, "w2": w2, "b2": b2,
            "dim": dim, "dim_hidden": dim_hidden}


def cdefunc_reference(t, z, params):
    del t
    h = jnp.maximum(z @ params["w1"] + params["b1"][0], 0.0)
    o = jnp.tanh(h @ params["w2"] + params["b2"][0])
    return o.reshape(z.shape[0], params["dim_hidden"], params["dim"])


if __name__ == "__main__":
    key = jax.random.PRNGKey(0)
    kp, kz = jax.random.split(key)

    dim, dim_hidden, batch = 4, 32, 8
    params = init_params(kp, dim, dim_hidden)

    z = jax.random.normal(kz, (batch, dim_hidden), dtype=jnp.float32)
    t = jnp.float32(0.0)  # unused, parity with torch signature

    out = cdefunc_forward(t, z, params)
    out = jax.block_until_ready(out)

    ref = cdefunc_reference(t, z, params)
    assert out.shape == (batch, dim_hidden, dim), out.shape
    assert jnp.allclose(out, ref, atol=1e-5, rtol=1e-5)

    print("KERNEL_OK")
</pallas_src>

<mosaic_0001>
module attributes {stable_mosaic.version = 11 : i64} {
  func.func @_cdefunc_kernel(%arg0: i32, %arg1: memref<8x32xf32, #tpu.memory_space<vmem>>, %arg2: memref<32x128xf32, #tpu.memory_space<vmem>>, %arg3: memref<1x128xf32, #tpu.memory_space<vmem>>, %arg4: memref<128x128xf32, #tpu.memory_space<vmem>>, %arg5: memref<1x128xf32, #tpu.memory_space<vmem>>, %arg6: memref<8x128xf32, #tpu.memory_space<vmem>>) attributes {dimension_semantics = [#tpu.dimension_semantics<parallel>], iteration_bounds = array<i64: 1>, scalar_prefetch = 0 : i64, scratch_operands = 0 : i64, tpu.core_type = #tpu.core_type<tc>, window_params = [{transform_indices = @transform_0, window_bounds = array<i64: 8, 32>}, {pipeline_mode = #tpu.pipeline_mode<synchronous>, transform_indices = @transform_1, window_bounds = array<i64: 32, 128>}, {pipeline_mode = #tpu.pipeline_mode<synchronous>, transform_indices = @transform_2, window_bounds = array<i64: 1, 128>}, {pipeline_mode = #tpu.pipeline_mode<synchronous>, transform_indices = @transform_3, window_bounds = array<i64: 128, 128>}, {pipeline_mode = #tpu.pipeline_mode<synchronous>, transform_indices = @transform_4, window_bounds = array<i64: 1, 128>}, {transform_indices = @transform_5, window_bounds = array<i64: 8, 128>}]} {
    %c0 = arith.constant 0 : index
    %c0_0 = arith.constant 0 : index
    %0 = vector.load %arg1[%c0, %c0_0] : memref<8x32xf32, #tpu.memory_space<vmem>>, vector<8x32xf32>
    %c0_1 = arith.constant 0 : index
    %c0_2 = arith.constant 0 : index
    %1 = vector.load %arg2[%c0_1, %c0_2] : memref<32x128xf32, #tpu.memory_space<vmem>>, vector<32x128xf32>
    %cst = arith.constant dense<0.000000e+00> : vector<8x128xf32>
    %2 = tpu.matmul %0, %1, %cst {dimension_numbers = #tpu.dot_dimension_numbers<[1], [0], [0], [1], [0, 0, 1, 1], [], []>} : vector<8x32xf32>, vector<32x128xf32>, vector<8x128xf32> -> vector<8x128xf32>
    %c0_3 = arith.constant 0 : index
    %c0_4 = arith.constant 0 : index
    %3 = vector.load %arg3[%c0_3, %c0_4] : memref<1x128xf32, #tpu.memory_space<vmem>>, vector<1x128xf32>
    %4 = vector.broadcast %3 : vector<1x128xf32> to vector<8x128xf32>
    %5 = arith.addf %2, %4 : vector<8x128xf32>
    %cst_5 = arith.constant 0.000000e+00 : f32
    %6 = vector.broadcast %cst_5 : f32 to vector<8x128xf32>
    %7 = arith.maximumf %5, %6 : vector<8x128xf32>
    %c0_6 = arith.constant 0 : index
    %c0_7 = arith.constant 0 : index
    %8 = vector.load %arg4[%c0_6, %c0_7] : memref<128x128xf32, #tpu.memory_space<vmem>>, vector<128x128xf32>
    %cst_8 = arith.constant dense<0.000000e+00> : vector<8x128xf32>
    %9 = tpu.matmul %7, %8, %cst_8 {dimension_numbers = #tpu.dot_dimension_numbers<[1], [0], [0], [1], [0, 0, 1, 1], [], []>} : vector<8x128xf32>, vector<128x128xf32>, vector<8x128xf32> -> vector<8x128xf32>
    %c0_9 = arith.constant 0 : index
    %c0_10 = arith.constant 0 : index
    %10 = vector.load %arg5[%c0_9, %c0_10] : memref<1x128xf32, #tpu.memory_space<vmem>>, vector<1x128xf32>
    %11 = vector.broadcast %10 : vector<1x128xf32> to vector<8x128xf32>
    %12 = arith.addf %9, %11 : vector<8x128xf32>
    %13 = math.tanh %12 : vector<8x128xf32>
    %c0_11 = arith.constant 0 : index
    %c0_12 = arith.constant 0 : index
    %14 = vector.load %arg6[%c0_11, %c0_12] : memref<8x128xf32, #tpu.memory_space<vmem>>, vector<8x128xf32>
    tpu.vector_store %arg6[%c0_11, %c0_12], %13 {strides = array<i32>} : memref<8x128xf32, #tpu.memory_space<vmem>>, vector<8x128xf32>,
    return
  }
  func.func @transform_0(%arg0: i32) -> (i32, i32) {
    %c0_i32 = arith.constant 0 : i32
    %c0_i32_0 = arith.constant 0 : i32
    return %arg0, %c0_i32 : i32, i32
  }
  func.func @transform_1(%arg0: i32) -> (i32, i32) {
    %c0_i32 = arith.constant 0 : i32
    %c0_i32_0 = arith.constant 0 : i32
    %c0_i32_1 = arith.constant 0 : i32
    return %c0_i32, %c0_i32_0 : i32, i32
  }
  func.func @transform_2(%arg0: i32) -> (i32, i32) {
    %c0_i32 = arith.constant 0 : i32
    %c0_i32_0 = arith.constant 0 : i32
    %c0_i32_1 = arith.constant 0 : i32
    return %c0_i32, %c0_i32_0 : i32, i32
  }
  func.func @transform_3(%arg0: i32) -> (i32, i32) {
    %c0_i32 = arith.constant 0 : i32
    %c0_i32_0 = arith.constant 0 : i32
    %c0_i32_1 = arith.constant 0 : i32
    return %c0_i32, %c0_i32_0 : i32, i32
  }
  func.func @transform_4(%arg0: i32) -> (i32, i32) {
    %c0_i32 = arith.constant 0 : i32
    %c0_i32_0 = arith.constant 0 : i32
    %c0_i32_1 = arith.constant 0 : i32
    return %c0_i32, %c0_i32_0 : i32, i32
  }
  func.func @transform_5(%arg0: i32) -> (i32, i32) {
    %c0_i32 = arith.constant 0 : i32
    %c0_i32_0 = arith.constant 0 : i32
    return %arg0, %c0_i32 : i32, i32
  }
}

</mosaic_0001>

<llo_original>
// kernel: _cdefunc_call.1
$region0: #{_cdefunc_call.1}
  #allocation0 [shape = 'u32[]', space=smem, size = 0x4, offset = 0x4, fixed_abs, tag = 'smem constant byte address 0x4 - core index']
  #allocation1 [shape = 'u32[144,128]{1,0:T(1,128)}', space=vmem, size = 0x12000, scoped, tag = 'internal scratch']
  %s0 = inlined_call_operand.hbm [shape: f32[8,32], index: 0, kind: input, shape index: {}]
  %s1 = inlined_call_operand.hbm [shape: f32[32,128], index: 1, kind: input, shape index: {}]
  %s2 = inlined_call_operand.vmem [shape: f32[1,128], index: 2, kind: input, shape index: {}]
  %s3 = inlined_call_operand.hbm [shape: f32[128,128], index: 3, kind: input, shape index: {}]
  %s4 = inlined_call_operand.vmem [shape: f32[1,128], index: 4, kind: input, shape index: {}]
  %s5 = inlined_call_operand.vmem [shape: f32[8,128], index: 5, kind: output, shape index: {}]
  %s6 = sld [smem:[#allocation0]]
  $region42: #{_cdefunc_call.1} parent=0
    _
  %s8 = ssub.s32 1, %s6
  %s9 = scalar_select 0, %s8, %s6
  $region1: #{_cdefunc_call.1} parent=0
    #allocation2 [shape = 'u8[4096]{0}', space=vmem, size = 0x1000, scoped, tag = 'input window, operand 0, single buffered']
    #allocation3 [shape = 's32[1]{0}', space=sflag, size = 0x4, scoped, tag = 'scoped memory for _cdefunc_call.1']
    #allocation4 [shape = 'u8[16384]{0}', space=vmem, size = 0x4000, scoped, tag = 'input window, operand 1, single buffered']
    #allocation5 [shape = 's32[1]{0}', space=sflag, size = 0x4, scoped, tag = 'scoped memory for _cdefunc_call.1']
    #allocation6 [shape = 'u8[65536]{0}', space=vmem, size = 0x10000, scoped, tag = 'input window, operand 3, single buffered']
    %10 = vsyncpa [#allocation3], 0
    %11 = vsyncpa [#allocation5], 0
    // Predicated region
    $region2: #{_cdefunc_call.1} parent=1 // pred_check
      _
    $region3: #{_cdefunc_call.1} parent=1 // pred_check_branch
      %13 = sbr.rel (0) target = $region5
    $region4: #{_cdefunc_call.1} parent=1 // pred_region
      %s15 = ssub.s32 128, 128
      %16 = vsyncadd [#allocation3], %s15
      %s18 = sshll.u32 [#allocation2], 4
      %s19 = int_to_ptr.vmem [resolvable:$true] %s18
      %21 = dma.hbm_to_vmem [thread:$0]  %s0, 128, %s19, [#allocation3]
    $region5: #{_cdefunc_call.1} parent=1 // pred_fallthru
      _
    // Predicated region
    $region6: #{_cdefunc_call.1} parent=1 // pred_check
      _
    $region7: #{_cdefunc_call.1} parent=1 // pred_check_branch
      %23 = sbr.rel (0) target = $region9
    $region8: #{_cdefunc_call.1} parent=1 // pred_region
      %s25 = ssub.s32 512, 512
      %26 = vsyncadd [#allocation5], %s25
      %s27 = sshll.u32 [#allocation4], 4
      %s28 = int_to_ptr.vmem [resolvable:$true] %s27
      %33 = dma.hbm_to_vmem [thread:$0]  %s1, 512, %s28, [#allocation5], 128, 128, 8
    $region9: #{_cdefunc_call.1} parent=1 // pred_fallthru
      _
    // Predicated region
    $region10: #{_cdefunc_call.1} parent=1 // pred_check
      _
    $region11: #{_cdefunc_call.1} parent=1 // pred_check_branch
      %35 = sbr.rel (0) target = $region13
    $region12: #{_cdefunc_call.1} parent=1 // pred_region
      _
    $region13: #{_cdefunc_call.1} parent=1 // pred_fallthru
      _
    // Predicated region
    $region14: #{_cdefunc_call.1} parent=1 // pred_check
      _
    $region15: #{_cdefunc_call.1} parent=1 // pred_check_branch
      %37 = sbr.rel (0) target = $region17
    $region16: #{_cdefunc_call.1} parent=1 // pred_region
      %s39 = ssub.s32 2048, 2048
      %40 = vsyncadd [#allocation5], %s39
      %s41 = sshll.u32 [#allocation6], 4
      %s42 = int_to_ptr.vmem [resolvable:$true] %s41
      %47 = dma.hbm_to_vmem [thread:$0]  %s3, 2048, %s42, [#allocation5], 128, 128, 8
    $region17: #{_cdefunc_call.1} parent=1 // pred_fallthru
      _
    // Predicated region
    $region18: #{_cdefunc_call.1} parent=1 // pred_check
      _
    $region19: #{_cdefunc_call.1} parent=1 // pred_check_branch
      %49 = sbr.rel (0) target = $region21
    $region20: #{_cdefunc_call.1} parent=1 // pred_region
      _
    $region21: #{_cdefunc_call.1} parent=1 // pred_fallthru
      _
    // Predicated region
    $region22: #{_cdefunc_call.1} parent=1 // pred_check
      _
    $region23: #{_cdefunc_call.1} parent=1 // pred_check_branch
      %51 = sbr.rel (0) target = $region25
    $region24: #{_cdefunc_call.1} parent=1 // pred_region
      %52 = dma.done [#allocation3], 128
    $region25: #{_cdefunc_call.1} parent=1 // pred_fallthru
      _
    // Predicated region
    $region26: #{_cdefunc_call.1} parent=1 // pred_check
      _
    $region27: #{_cdefunc_call.1} parent=1 // pred_check_branch
      %54 = sbr.rel (0) target = $region29
    $region28: #{_cdefunc_call.1} parent=1 // pred_region
      %55 = dma.done [#allocation5], 512
    $region29: #{_cdefunc_call.1} parent=1 // pred_fallthru
      _
    // Predicated region
    $region30: #{_cdefunc_call.1} parent=1 // pred_check
      _
    $region31: #{_cdefunc_call.1} parent=1 // pred_check_branch
      %57 = sbr.rel (0) target = $region33
    $region32: #{_cdefunc_call.1} parent=1 // pred_region
      %58 = dma.done [#allocation5], 2048
    $region33: #{_cdefunc_call.1} parent=1 // pred_fallthru
      _
    %v59 = vld [vmem:[#allocation2] sm:$0xff]
    %v60 = vld [vmem:[#allocation4] sm:$0xff]
    %v61 = vld [vmem:[#allocation4 + $0x8] sm:$0xff]
    %v62 = vld [vmem:[#allocation4 + $0x10] sm:$0xff]
    %v63 = vld [vmem:[#allocation4 + $0x18] sm:$0xff]
    %v64 = vld [vmem:[%s2] sm:$0x1]
    %v66 = vlaneseq
    %v67 = vshrl.u32 %v66, 7
    %v68 = vsub.s32 0, %v67
    %v69 = vrot.slane %v64, %v68
    %vm71 = vcmask 261120
    %v73 = vsel %vm71, %v59, 0
    %75 = vmatprep.subr.mxu0 0.0
    %76 = vmatpush1.msra.mxu0 %v60
    %77 = vmatprep.subr.mxu0 0.0
    %78 = vmatpush1.msra.mxu0 %v61
    %79 = vmatprep.subr.mxu0 0.0
    %80 = vmatpush1.msra.mxu0 %v62
    %81 = vmatprep.subr.mxu0 0.0
    %82 = vmatpush1.msra.mxu0 %v63
    %83 = vmatprep.subr.mxu0 0.0
    %84 = vmatpush1.msra.mxu0 0.0
    %85 = vmatprep.subr.mxu0 0.0
    %86 = vmatpush1.msra.mxu0 0.0
    %87 = vmatprep.subr.mxu0 0.0
    %88 = vmatpush1.msra.mxu0 0.0
    %89 = vmatprep.subr.mxu0 0.0
    %90 = vmatpush1.msra.mxu0 0.0
    %91 = vmatprep.subr.mxu0 0.0
    %92 = vmatpush1.msra.mxu0 0.0
    %93 = vmatprep.subr.mxu0 0.0
    %94 = vmatpush1.msra.mxu0 0.0
    %95 = vmatprep.subr.mxu0 0.0
    %96 = vmatpush1.msra.mxu0 0.0
    %97 = vmatprep.subr.mxu0 0.0
    %98 = vmatpush1.msra.mxu0 0.0
    %99 = vmatprep.subr.mxu0 0.0
    %100 = vmatpush1.msra.mxu0 0.0
    %101 = vmatprep.subr.mxu0 0.0
    %102 = vmatpush1.msra.mxu0 0.0
    %103 = vmatprep.subr.mxu0 0.0
    %104 = vmatpush1.msra.mxu0 0.0
    %105 = vmatprep.subr.mxu0 0.0
    %106 = vmatpush1.msra.mxu0 0.0
    %107 = vmatprep.subr.mxu0 0.0
    %108 = vmatpush1.msra.mxu0 0.0
    %109 = vmatprep.subr.mxu0 0.0
    %110 = vmatpush1.msra.mxu0 0.0
    %111 = vmatprep.subr.mxu0 0.0
    %112 = vmatpush1.msra.mxu0 0.0
    %113 = vmatprep.subr.mxu0 0.0
    %114 = vmatpush1.msra.mxu0 0.0
    %115 = vmatprep.subr.mxu0 0.0
    %116 = vmatpush1.msra.mxu0 0.0
    %117 = vmatprep.subr.mxu0 0.0
    %118 = vmatpush1.msra.mxu0 0.0
    %119 = vmatprep.subr.mxu0 0.0
    %120 = vmatpush1.msra.mxu0 0.0
    %121 = vmatprep.subr.mxu0 0.0
    %122 = vmatpush1.msra.mxu0 0.0
    %123 = vmatprep.subr.mxu0 0.0
    %124 = vmatpush1.msra.mxu0 0.0
    %125 = vmatprep.subr.mxu0 0.0
    %126 = vmatpush1.msra.mxu0 0.0
    %127 = vmatprep.subr.mxu0 0.0
    %128 = vmatpush1.msra.mxu0 0.0
    %129 = vmatprep.subr.mxu0 0.0
    %130 = vmatpush1.msra.mxu0 0.0
    %131 = vmatprep.subr.mxu0 0.0
    %132 = vmatpush1.msra.mxu0 0.0
    %133 = vmatprep.subr.mxu0 0.0
    %134 = vmatpush1.msra.mxu0 0.0
    %135 = vmatprep.subr.mxu0 0.0
    %136 = vmatpush1.msra.mxu0 0.0
    %137 = vmatprep.subr.mxu0 0.0
    %138 = vmatpush1.msra.mxu0 0.0
    %139 = vmatprep.mubr.f32.mxu0 0.0
    %140 = vmatmul.mubr.f32.gmra.mrb[0].mxu0 %v73
    %v141 = vpop.f32.mrb[0].mxu0
    %v142 = vadd.f32 %v69, %v141
    %v143 = vpop.f32.mrb[0].mxu0
    %144 = vdwg.mxu0
    %v145 = vmax.f32 %v142, 0.0
    %v146 = vld [vmem:[#allocation6] sm:$0xff]
    %v147 = vld [vmem:[#allocation6 + $0x8] sm:$0xff]
    %v148 = vld [vmem:[#allocation6 + $0x10] sm:$0xff]
    %v149 = vld [vmem:[#allocation6 + $0x18] sm:$0xff]
    %v150 = vld [vmem:[#allocation6 + $0x20] sm:$0xff]
    %v151 = vld [vmem:[#allocation6 + $0x28] sm:$0xff]
    %v152 = vld [vmem:[#allocation6 + $0x30] sm:$0xff]
    %v153 = vld [vmem:[#allocation6 + $0x38] sm:$0xff]
    %v154 = vld [vmem:[#allocation6 + $0x40] sm:$0xff]
    %v155 = vld [vmem:[#allocation6 + $0x48] sm:$0xff]
    %v156 = vld [vmem:[#allocation6 + $0x50] sm:$0xff]
    %v157 = vld [vmem:[#allocation6 + $0x58] sm:$0xff]
    %v158 = vld [vmem:[#allocation6 + $0x60] sm:$0xff]
    %v159 = vld [vmem:[#allocation6 + $0x68] sm:$0xff]
    %v160 = vld [vmem:[#allocation6 + $0x70] sm:$0xff]
    %v161 = vld [vmem:[#allocation6 + $0x78] sm:$0xff]
    %v162 = vld [vmem:[%s4] sm:$0x1]
    %v164 = vlaneseq
    %v165 = vshrl.u32 %v164, 7
    %v166 = vsub.s32 0, %v165
    %v167 = vrot.slane %v162, %v166
    %169 = vmatprep.subr.mxu0 0.0
    %170 = vmatpush1.msra.mxu0 %v146
    %171 = vmatprep.subr.mxu0 0.0
    %172 = vmatpush1.msra.mxu0 %v147
    %173 = vmatprep.subr.mxu0 0.0
    %174 = vmatpush1.msra.mxu0 %v148
    %175 = vmatprep.subr.mxu0 0.0
    %176 = vmatpush1.msra.mxu0 %v149
    %177 = vmatprep.subr.mxu0 0.0
    %178 = vmatpush1.msra.mxu0 %v150
    %179 = vmatprep.subr.mxu0 0.0
    %180 = vmatpush1.msra.mxu0 %v151
    %181 = vmatprep.subr.mxu0 0.0
    %182 = vmatpush1.msra.mxu0 %v152
    %183 = vmatprep.subr.mxu0 0.0
    %184 = vmatpush1.msra.mxu0 %v153
    %185 = vmatprep.subr.mxu0 0.0
    %186 = vmatpush1.msra.mxu0 %v154
    %187 = vmatprep.subr.mxu0 0.0
    %188 = vmatpush1.msra.mxu0 %v155
    %189 = vmatprep.subr.mxu0 0.0
    %190 = vmatpush1.msra.mxu0 %v156
    %191 = vmatprep.subr.mxu0 0.0
    %192 = vmatpush1.msra.mxu0 %v157
    %193 = vmatprep.subr.mxu0 0.0
    %194 = vmatpush1.msra.mxu0 %v158
    %195 = vmatprep.subr.mxu0 0.0
    %196 = vmatpush1.msra.mxu0 %v159
    %197 = vmatprep.subr.mxu0 0.0
    %198 = vmatpush1.msra.mxu0 %v160
    %199 = vmatprep.subr.mxu0 0.0
    %200 = vmatpush1.msra.mxu0 %v161
    %201 = vmatprep.subr.mxu0 0.0
    %202 = vmatpush1.msra.mxu0 0.0
    %203 = vmatprep.subr.mxu0 0.0
    %204 = vmatpush1.msra.mxu0 0.0
    %205 = vmatprep.subr.mxu0 0.0
    %206 = vmatpush1.msra.mxu0 0.0
    %207 = vmatprep.subr.mxu0 0.0
    %208 = vmatpush1.msra.mxu0 0.0
    %209 = vmatprep.subr.mxu0 0.0
    %210 = vmatpush1.msra.mxu0 0.0
    %211 = vmatprep.subr.mxu0 0.0
    %212 = vmatpush1.msra.mxu0 0.0
    %213 = vmatprep.subr.mxu0 0.0
    %214 = vmatpush1.msra.mxu0 0.0
    %215 = vmatprep.subr.mxu0 0.0
    %216 = vmatpush1.msra.mxu0 0.0
    %217 = vmatprep.subr.mxu0 0.0
    %218 = vmatpush1.msra.mxu0 0.0
    %219 = vmatprep.subr.mxu0 0.0
    %220 = vmatpush1.msra.mxu0 0.0
    %221 = vmatprep.subr.mxu0 0.0
    %222 = vmatpush1.msra.mxu0 0.0
    %223 = vmatprep.subr.mxu0 0.0
    %224 = vmatpush1.msra.mxu0 0.0
    %225 = vmatprep.subr.mxu0 0.0
    %226 = vmatpush1.msra.mxu0 0.0
    %227 = vmatprep.subr.mxu0 0.0
    %228 = vmatpush1.msra.mxu0 0.0
    %229 = vmatprep.subr.mxu0 0.0
    %230 = vmatpush1.msra.mxu0 0.0
    %231 = vmatprep.subr.mxu0 0.0
    %232 = vmatpush1.msra.mxu0 0.0
    %233 = vmatprep.mubr.f32.mxu0 0.0
    %234 = vmatmul.mubr.f32.gmra.mrb[0].mxu0 %v145
    %v235 = vpop.f32.mrb[0].mxu0
    %v236 = vadd.f32 %v167, %v235
    %v237 = vpop.f32.mrb[0].mxu0
    %238 = vdwg.mxu0
    %v239 = vtanh.pop %v236
    %240 = vst [vmem:[%s5] sm:$0xff] %v239
    // Predicated region
    $region34: #{_cdefunc_call.1} parent=1 // pred_check
      _
    $region35: #{_cdefunc_call.1} parent=1 // pred_check_branch
      %242 = sbr.rel (0) target = $region37
    $region36: #{_cdefunc_call.1} parent=1 // pred_region
      _
    $region37: #{_cdefunc_call.1} parent=1 // pred_fallthru
      _
    // Predicated region
    $region38: #{_cdefunc_call.1} parent=1 // pred_check
      _
    $region39: #{_cdefunc_call.1} parent=1 // pred_check_branch
      %244 = sbr.rel (0) target = $region41
    $region40: #{_cdefunc_call.1} parent=1 // pred_region
      _
    $region41: #{_cdefunc_call.1} parent=1 // pred_fallthru
      _
    %245 = vsyncpa [#allocation3], 1
    %246 = vsyncpa [#allocation5], 1

</llo_original>
